<compile_context>
chip_gen: v7x
topology: tpu7x:2x2x1
jax: 0.10.0
libtpu: 0.0.40
codegen_flags: <defaults>
</compile_context>

<pallas_src>
import math

import jax
import jax.numpy as jnp
from jax.experimental import pallas as pl
from jax.experimental.pallas import tpu as pltpu

_LANES = 128


def _cdiv(a, b):
    return -(-a // b)


def _round_up(a, b):
    return _cdiv(a, b) * b


def _device_kind():
    try:
        return jax.devices()[0].device_kind.lower()
    except Exception:
        return ""


def _make_fusion_kernel(n):
    """Kernel over n separate input tiles + one output tile."""

    def kernel(w_ref, *refs):
        # w_ref      : SMEM (n,) float32  -- pre-normalized fusion weights
        # refs[:n]   : VMEM (TM, 128)     -- input tiles
        # refs[n]    : VMEM (TM, 128)     -- output tile
        x_refs = refs[:n]
        o_ref = refs[n]

        acc = w_ref[0] * x_refs[0][...].astype(jnp.float32)
        for i in range(1, n):
            acc = acc + w_ref[i] * x_refs[i][...].astype(jnp.float32)

        o_ref[...] = jnp.maximum(acc, 0.0).astype(o_ref.dtype)

    return kernel


def _run_fusion_kernel(w_norm, xs2d, dtype):
    """Run the Pallas kernel on n lane-dense (M, 128) arrays."""
    n = len(xs2d)
    M, L = xs2d[0].shape
    itemsize = jnp.dtype(dtype).itemsize
    sub = {4: 8, 2: 16, 1: 32}.get(itemsize, 8)

    kind = _device_kind()
    is_v5e = ("v5 lite" in kind) or ("v5e" in kind) or ("v5lite" in kind)
    is_v7 = "v7" in kind
    num_tc = 2 if (is_v7 or "v4" in kind) else 1

    # ---- row-tile size (generation + dtype aware) ---------------------------
    tm_cap = 4096 if is_v7 else 2048
    budget_bytes = (12 << 20) if is_v5e else (28 << 20)

    in_bufs = 2   # default double-buffering; may be raised to 3 below
    out_bufs = 2

    def rows_for(in_b):
        per_row = L * itemsize * (n * in_b + out_bufs)
        return max(sub, (budget_bytes // per_row // sub) * sub)

    TM = min(tm_cap, rows_for(in_bufs))
    if M <= TM:
        if num_tc >= 2 and M >= 2 * 1024:
            # Two shards for the second TensorCore, each >= 1024 rows.
            TM = _round_up(_cdiv(M, 2), sub)
        else:
            TM = M        # single step; block == full array dims (always legal)
    else:
        TM = max(sub, (TM // sub) * sub)

    grid_steps = _cdiv(M, TM)

    # Deeper input buffering on v7x when the pipeline is long enough.
    use_buffered3 = (
        is_v7
        and grid_steps >= 4
        and (n * 3 + out_bufs) * TM * L * itemsize <= budget_bytes
    )
    if use_buffered3:
        in_bufs = 3

    idx_map = lambda i, w_ref: (i, 0)
    in_spec = pl.BlockSpec((TM, L), idx_map)
    if use_buffered3:
        try:
            in_spec = pl.BlockSpec((TM, L), idx_map, pipeline_mode=pl.Buffered(3))
        except TypeError:
            in_spec = pl.BlockSpec((TM, L), idx_map)
    out_spec = pl.BlockSpec((TM, L), idx_map)

    vmem_needed = (n * in_bufs + out_bufs) * TM * L * itemsize
    vmem_limit = int(min(max(vmem_needed + (4 << 20), 16 << 20), 48 << 20))

    cost = pl.CostEstimate(
        flops=2 * n * M * L,
        transcendentals=0,
        bytes_accessed=(n + 1) * M * L * itemsize,
    )

    return pl.pallas_call(
        _make_fusion_kernel(n),
        out_shape=jax.ShapeDtypeStruct((M, L), dtype),
        grid_spec=pltpu.PrefetchScalarGridSpec(
            num_scalar_prefetch=1,               # w_norm -> SMEM
            grid=(grid_steps,),
            in_specs=[in_spec] * n,
            out_specs=out_spec,
        ),
        compiler_params=pltpu.CompilerParams(
            dimension_semantics=("parallel",),
            vmem_limit_bytes=vmem_limit,
        ),
        cost_estimate=cost,
    )(w_norm, *xs2d)


def fast_normalized_fusion(w, *xs):
    """JAX wrapper: w is (n_inputs,), xs are n_inputs tensors of equal shape."""
    n = len(xs)
    assert n >= 1 and w.shape == (n,)
    shape = xs[0].shape
    dtype = xs[0].dtype
    for x in xs:
        assert x.shape == shape, "all fusion inputs must share the same shape"
        assert x.dtype == dtype, "all fusion inputs must share the same dtype"
    total = math.prod(shape)

    # Hoisted weight normalization: n scalars only (not tensor pre-scaling).
    w_relu = jnp.maximum(w.astype(jnp.float32), 0.0)
    w_norm = w_relu / (jnp.sum(w_relu) + 0.0001)

    rem = total % _LANES
    main = total - rem

    if main == 0:
        # Tiny tensor (< 128 elements): plain jnp is cheaper than a kernel launch.
        acc = sum(x.astype(jnp.float32) * w_norm[i] for i, x in enumerate(xs))
        return jnp.maximum(acc, 0.0).astype(dtype)

    M = main // _LANES
    flats = [x.reshape(-1) for x in xs]
    if rem == 0:
        # Zero-copy path: contiguous reshape to (M, 128) is free.
        xs2d = [f.reshape(M, _LANES) for f in flats]
    else:
        xs2d = [f[:main].reshape(M, _LANES) for f in flats]

    out2d = _run_fusion_kernel(w_norm, xs2d, dtype)
    out_flat = out2d.reshape(-1)

    if rem != 0:
        # <128-element tail handled with plain jnp (no full-array pad copies).
        tail_acc = sum(
            f[main:].astype(jnp.float32) * w_norm[i] for i, f in enumerate(flats)
        )
        tail = jnp.maximum(tail_acc, 0.0).astype(dtype)
        out_flat = jnp.concatenate([out_flat, tail])

    return out_flat.reshape(shape)


def _reference(w, *xs):
    weights = jnp.maximum(w.astype(jnp.float32), 0.0)
    weights_norm = weights / (weights.sum() + 0.0001)
    acc = sum(x.astype(jnp.float32) * wn for x, wn in zip(xs, weights_norm))
    return jnp.maximum(acc, 0.0).astype(xs[0].dtype)


if __name__ == "__main__":
    key = jax.random.PRNGKey(0)
    n_inputs = 2
    B, C, H, W = 2, 4, 16, 16

    k1, k2 = jax.random.split(key)
    x1 = jax.random.normal(k1, (B, C, H, W), dtype=jnp.float32)
    x2 = jax.random.normal(k2, (B, C, H, W), dtype=jnp.float32)

    # Deterministic param init, matching nn.Parameter(torch.ones(n_inputs)).
    w = jnp.ones((n_inputs,), dtype=jnp.float32)

    out = jax.block_until_ready(fast_normalized_fusion(w, x1, x2))
    ref = _reference(w, x1, x2)
    assert out.shape == (B, C, H, W)
    assert jnp.allclose(out, ref, atol=1e-5, rtol=1e-5)

    # Odd-shape path: kernel on the 128-divisible prefix, jnp tail.
    k3, k4 = jax.random.split(k2)
    y1 = jax.random.normal(k3, (3, 5, 7, 9), dtype=jnp.float32)
    y2 = jax.random.normal(k4, (3, 5, 7, 9), dtype=jnp.float32)
    out_odd = jax.block_until_ready(fast_normalized_fusion(w, y1, y2))
    assert jnp.allclose(out_odd, _reference(w, y1, y2), atol=1e-5, rtol=1e-5)

    # Larger 3-input case to exercise a multi-step grid.
    w3 = jnp.ones((3,), dtype=jnp.float32)
    kz = jax.random.split(k4, 3)
    zs = [jax.random.normal(kz[i], (4, 32, 64, 64), dtype=jnp.float32)
          for i in range(3)]
    out_big = jax.block_until_ready(fast_normalized_fusion(w3, *zs))
    assert jnp.allclose(out_big, _reference(w3, *zs), atol=1e-5, rtol=1e-5)

    print("KERNEL_OK")
</pallas_src>

<mosaic_0001>
module attributes {stable_mosaic.version = 11 : i64} {
  func.func @kernel(%arg0: i32, %arg1: memref<2xf32, #tpu.memory_space<smem>>, %arg2: memref<16x128xf32, #tpu.memory_space<vmem>>, %arg3: memref<16x128xf32, #tpu.memory_space<vmem>>, %arg4: memref<16x128xf32, #tpu.memory_space<vmem>>) attributes {dimension_semantics = [#tpu.dimension_semantics<parallel>], iteration_bounds = array<i64: 1>, scalar_prefetch = 1 : i64, scratch_operands = 0 : i64, tpu.core_type = #tpu.core_type<tc>, window_params = [{transform_indices = @transform_0, window_bounds = array<i64: 16, 128>}, {transform_indices = @transform_1, window_bounds = array<i64: 16, 128>}, {transform_indices = @transform_2, window_bounds = array<i64: 16, 128>}]} {
    %c0 = arith.constant 0 : index
    %0 = memref.load %arg1[%c0] : memref<2xf32, #tpu.memory_space<smem>>
    %c0_0 = arith.constant 0 : index
    %c0_1 = arith.constant 0 : index
    %1 = vector.load %arg2[%c0_0, %c0_1] : memref<16x128xf32, #tpu.memory_space<vmem>>, vector<16x128xf32>
    %2 = vector.broadcast %0 : f32 to vector<16x128xf32>
    %3 = arith.mulf %2, %1 : vector<16x128xf32>
    %c1 = arith.constant 1 : index
    %4 = memref.load %arg1[%c1] : memref<2xf32, #tpu.memory_space<smem>>
    %c0_2 = arith.constant 0 : index
    %c0_3 = arith.constant 0 : index
    %5 = vector.load %arg3[%c0_2, %c0_3] : memref<16x128xf32, #tpu.memory_space<vmem>>, vector<16x128xf32>
    %6 = vector.broadcast %4 : f32 to vector<16x128xf32>
    %7 = arith.mulf %6, %5 : vector<16x128xf32>
    %8 = arith.addf %3, %7 : vector<16x128xf32>
    %cst = arith.constant 0.000000e+00 : f32
    %9 = vector.broadcast %cst : f32 to vector<16x128xf32>
    %10 = arith.maximumf %8, %9 : vector<16x128xf32>
    %c0_4 = arith.constant 0 : index
    %c0_5 = arith.constant 0 : index
    %11 = vector.load %arg4[%c0_4, %c0_5] : memref<16x128xf32, #tpu.memory_space<vmem>>, vector<16x128xf32>
    tpu.vector_store %arg4[%c0_4, %c0_5], %10 {strides = array<i32>} : memref<16x128xf32, #tpu.memory_space<vmem>>, vector<16x128xf32>,
    return
  }
  func.func @transform_0(%arg0: i32, %arg1: memref<2xf32, #tpu.memory_space<smem>>) -> (i32, i32) {
    %c0_i32 = arith.constant 0 : i32
    %c0_i32_0 = arith.constant 0 : i32
    return %arg0, %c0_i32 : i32, i32
  }
  func.func @transform_1(%arg0: i32, %arg1: memref<2xf32, #tpu.memory_space<smem>>) -> (i32, i32) {
    %c0_i32 = arith.constant 0 : i32
    %c0_i32_0 = arith.constant 0 : i32
    return %arg0, %c0_i32 : i32, i32
  }
  func.func @transform_2(%arg0: i32, %arg1: memref<2xf32, #tpu.memory_space<smem>>) -> (i32, i32) {
    %c0_i32 = arith.constant 0 : i32
    %c0_i32_0 = arith.constant 0 : i32
    return %arg0, %c0_i32 : i32, i32
  }
}

</mosaic_0001>

<llo_original>
// kernel: tpu_custom_call.1
$region0: #{tpu_custom_call.1}
  #allocation0 [shape = 'u32[]', space=smem, size = 0x4, offset = 0x4, fixed_abs, tag = 'smem constant byte address 0x4 - core index']
  #allocation1 [shape = 'u32[144,128]{1,0:T(1,128)}', space=vmem, size = 0x12000, scoped, tag = 'internal scratch']
  #allocation2 [shape = 's32[1]{0}', space=sflag, size = 0x4, scoped, tag = 'scoped memory for tpu_custom_call.1']
  #allocation3 [shape = 'u8[512]{0}', space=smem, size = 0x200, scoped, tag = 'prefetched SMEM operand 0']
  %s0 = inlined_call_operand.hbm [shape: f32[2], index: 0, kind: input, shape index: {}]
  %s1 = inlined_call_operand.hbm [shape: f32[16,128], index: 1, kind: input, shape index: {}]
  %s2 = inlined_call_operand.hbm [shape: f32[16,128], index: 2, kind: input, shape index: {}]
  %s3 = inlined_call_operand.hbm [shape: f32[16,128], index: 3, kind: output, shape index: {}]
  %s4 = sld [smem:[#allocation0]]
  $region26: #{tpu_custom_call.1} parent=0
    _
  %s6 = ssub.s32 1, %s4
  %s7 = scalar_select 0, %s6, %s4
  %9 = dma.hbm_to_smem %s0, 16, [#allocation3], [#allocation2]
  %10 = dma.done [#allocation2], 16
  %11 = sfence
  $region1: #{tpu_custom_call.1} parent=0
    #allocation4 [shape = 'u8[8192]{0}', space=vmem, size = 0x2000, scoped, tag = 'input window, operand 1, single buffered']
    #allocation5 [shape = 's32[1]{0}', space=sflag, size = 0x4, scoped, tag = 'scoped memory for tpu_custom_call.1']
    #allocation6 [shape = 's32[1]{0}', space=sflag, size = 0x4, scoped, tag = 'scoped memory for tpu_custom_call.1']
    #allocation7 [shape = 'u8[8192]{0}', space=vmem, size = 0x2000, scoped, tag = 'input window, operand 2, single buffered']
    #allocation8 [shape = 's32[1]{0}', space=sflag, size = 0x4, scoped, tag = 'scoped memory for tpu_custom_call.1']
    #allocation9 [shape = 'u8[8192]{0}', space=vmem, size = 0x2000, scoped, tag = 'output window, operand 0, single buffered']
    %12 = vsyncpa [#allocation5], 0
    %13 = vsyncpa [#allocation8], 0
    %14 = vsyncpa [#allocation6], 0
    // Predicated region
    $region2: #{tpu_custom_call.1} parent=1 // pred_check
      _
    $region3: #{tpu_custom_call.1} parent=1 // pred_check_branch
      %16 = sbr.rel (0) target = $region5
    $region4: #{tpu_custom_call.1} parent=1 // pred_region
      %s18 = ssub.s32 256, 256
      %19 = vsyncadd [#allocation5], %s18
      %s20 = sshll.u32 [#allocation4], 4
      %s21 = int_to_ptr.vmem [resolvable:$true] %s20
      %26 = dma.hbm_to_vmem [thread:$0]  %s1, 256, %s21, [#allocation5], 128, 128, 8
    $region5: #{tpu_custom_call.1} parent=1 // pred_fallthru
      _
    // Predicated region
    $region6: #{tpu_custom_call.1} parent=1 // pred_check
      _
    $region7: #{tpu_custom_call.1} parent=1 // pred_check_branch
      %28 = sbr.rel (0) target = $region9
    $region8: #{tpu_custom_call.1} parent=1 // pred_region
      %s30 = ssub.s32 256, 256
      %31 = vsyncadd [#allocation8], %s30
      %s32 = sshll.u32 [#allocation7], 4
      %s33 = int_to_ptr.vmem [resolvable:$true] %s32
      %38 = dma.hbm_to_vmem [thread:$0]  %s2, 256, %s33, [#allocation8], 128, 128, 8
    $region9: #{tpu_custom_call.1} parent=1 // pred_fallthru
      _
    // Predicated region
    $region10: #{tpu_custom_call.1} parent=1 // pred_check
      _
    $region11: #{tpu_custom_call.1} parent=1 // pred_check_branch
      %40 = sbr.rel (0) target = $region13
    $region12: #{tpu_custom_call.1} parent=1 // pred_region
      %41 = dma.done [#allocation5], 256
    $region13: #{tpu_custom_call.1} parent=1 // pred_fallthru
      _
    // Predicated region
    $region14: #{tpu_custom_call.1} parent=1 // pred_check
      _
    $region15: #{tpu_custom_call.1} parent=1 // pred_check_branch
      %43 = sbr.rel (0) target = $region17
    $region16: #{tpu_custom_call.1} parent=1 // pred_region
      %44 = dma.done [#allocation8], 256
    $region17: #{tpu_custom_call.1} parent=1 // pred_fallthru
      _
    %s45 = sld [smem:[#allocation3]]
    %v46 = vld [vmem:[#allocation4] sm:$0xff]
    %v47 = vld [vmem:[#allocation4 + $0x8] sm:$0xff]
    %v48 = vstv %s45
    %v49 = vmul.f32 %v48, %v46
    %v50 = vmul.f32 %v48, %v47
    %s51 = sld [smem:[#allocation3 + $0x1]]
    %v52 = vld [vmem:[#allocation7] sm:$0xff]
    %v53 = vld [vmem:[#allocation7 + $0x8] sm:$0xff]
    %v54 = vstv %s51
    %v55 = vmul.f32 %v54, %v52
    %v56 = vmul.f32 %v54, %v53
    %v57 = vadd.f32 %v49, %v55
    %v58 = vadd.f32 %v50, %v56
    %v59 = vmax.f32 %v57, 0.0
    %v60 = vmax.f32 %v58, 0.0
    %61 = vst [vmem:[#allocation9] sm:$0xff] %v59
    %62 = vst [vmem:[#allocation9 + $0x8] sm:$0xff] %v60
    // Predicated region
    $region18: #{tpu_custom_call.1} parent=1 // pred_check
      _
    $region19: #{tpu_custom_call.1} parent=1 // pred_check_branch
      %64 = sbr.rel (0) target = $region21
    $region20: #{tpu_custom_call.1} parent=1 // pred_region
      %s66 = ssub.s32 256, 256
      %67 = vsyncadd [#allocation6], %s66
      %s68 = sshll.u32 [#allocation9], 4
      %s69 = int_to_ptr.vmem [resolvable:$true] %s68
      %74 = dma.vmem_to_hbm [thread:$0]  %s69, 256, %s3, [#allocation6], 128, 128, 8
    $region21: #{tpu_custom_call.1} parent=1 // pred_fallthru
      _
    // Predicated region
    $region22: #{tpu_custom_call.1} parent=1 // pred_check
      _
    $region23: #{tpu_custom_call.1} parent=1 // pred_check_branch
      %76 = sbr.rel (0) target = $region25
    $region24: #{tpu_custom_call.1} parent=1 // pred_region
      %77 = dma.done [#allocation6], 256
    $region25: #{tpu_custom_call.1} parent=1 // pred_fallthru
      _
    %78 = vsyncpa [#allocation5], 1
    %79 = vsyncpa [#allocation8], 1
    %80 = vsyncpa [#allocation6], 1

</llo_original>
